<compile_context>
chip_gen: v7x
topology: tpu7x:2x2x1
jax: 0.10.0
libtpu: 0.0.40
codegen_flags: <defaults>
</compile_context>

<pallas_src>
import jax
import jax.numpy as jnp
from jax import lax
from jax.experimental import pallas as pl
from jax.experimental.pallas import tpu as pltpu
import numpy as np


# --------------------------------------------------------------------------- #
# Kernel
# --------------------------------------------------------------------------- #
def saem_kernel(x1_ref, x2_ref, w1_ref, b1_ref, w2_ref, b2_ref, wr_ref, out_ref):
    # x1/x2/out: (b_blk, C, HW) ; w*: (Ci, C) ; b*: (Ci, 1) ; wr: (1, HW)
    w1 = w1_ref[...]
    b1 = b1_ref[...]
    w2 = w2_ref[...]
    b2 = b2_ref[...]
    wr = wr_ref[...]

    b_blk = x1_ref.shape[0]

    def body(b, carry):
        x1 = x1_ref[b]                      # (C, HW)  dynamic leading-axis load
        x2 = x2_ref[b]                      # (C, HW)

        # 1x1 conv + folded eval-mode BN (affine) + sigmoid.
        # Tiny (Ci,C)@(C,HW) matmuls; the kernel is HBM-bandwidth bound so MXU
        # utilization here is irrelevant.
        t1 = jax.nn.sigmoid(
            jnp.dot(w1, x1, preferred_element_type=jnp.float32) + b1)   # (Ci, HW)
        t2 = jax.nn.sigmoid(
            jnp.dot(w2, x2, preferred_element_type=jnp.float32) + b2)   # (Ci, HW)

        # Re-associated reduction (the (HW, HW) affinity is never built):
        #   M[p] = sum_q wr[q] * (t1^T t2)^T[q, p]
        #        = sum_i ( sum_q wr[q] * t2[i, q] ) * t1[i, p]
        v = jnp.sum(t2 * wr, axis=-1, keepdims=True)      # (Ci, 1) lane reduce
        m = jnp.sum(v * t1, axis=0, keepdims=True)        # (1, HW) sublane reduce

        out_ref[b] = x1 * m                 # x1 * Affinity_M.expand_as(x1)
        return carry

    # fori_loop bounds the live range to a single iteration (no spills for
    # large HW), unlike a static Python unroll over the whole batch block.
    lax.fori_loop(0, b_blk, body, 0)


# --------------------------------------------------------------------------- #
# Wrapper
# --------------------------------------------------------------------------- #
def _round_up(x, m):
    return (x + m - 1) // m * m


def _tpu_info():
    """Returns (vmem_capacity_bytes, is_multi_tensorcore_chip) with fallbacks."""
    multi_tc = False
    try:
        kind = jax.devices()[0].device_kind.lower()
        multi_tc = "v7" in kind            # v7x: 2 TensorCores per chip
    except Exception:
        pass
    try:
        vmem_cap = int(pltpu.get_tpu_info().vmem_capacity_bytes)
    except Exception:
        vmem_cap = (64 if multi_tc else 128) * 1024 * 1024
    return vmem_cap, multi_tc


def spatial_enhance_module(x1, x2, params, *, max_batch_block=8):
    """x1, x2: (N, C, H, W) float32. Returns (N, C, H, W)."""
    N, C, H, W = x1.shape
    HW = H * W
    Ci = params["w1_eff"].shape[0]

    # No wrapper-side padding: every BlockSpec's trailing dims use the full
    # array extent (exempt from the (8,128) divisibility rule), avoiding the
    # extra HBM read+write pass that jnp.pad/out-slice would cost.
    x1f = x1.reshape(N, C, HW).astype(jnp.float32)
    x2f = x2.reshape(N, C, HW).astype(jnp.float32)
    wr = params["wr"].astype(jnp.float32)                      # (1, HW)
    # TODO(synk): optionally stream x1/x2 (and out) as bfloat16 and upcast in
    # the kernel to cut HBM traffic ~2x; kept f32 here to match reference.

    vmem_cap, multi_tc = _tpu_info()

    # VMEM layout pads sublanes to 8 and lanes to 128 -> size with padded dims.
    c_pad = _round_up(C, 8)
    ci_pad = _round_up(Ci, 8)
    hw_lane = _round_up(HW, 128)

    io_per_sample = 3 * 2 * c_pad * hw_lane * 4       # x1,x2,out, double-buffered
    live_bytes = (2 * ci_pad + 2 * c_pad + 8) * hw_lane * 4   # t1,t2,x1,x2,m live
    weight_bytes = 2 * ((2 * ci_pad * (_round_up(C, 128) + 128)) + 8 * hw_lane) * 4

    budget = int(vmem_cap * 0.6)
    fit = (budget - live_bytes - weight_bytes) // max(io_per_sample, 1)
    b_blk = max(1, min(max_batch_block, N, fit))
    # Keep >= 2 grid steps on dual-TC chips (v7x) so the "parallel" batch axis
    # can shard across both cores; single-TC v5e/v6e keep the biggest block.
    if multi_tc and N > 1:
        b_blk = min(b_blk, -(-N // 2))
    # TODO(synk): add a spatial (HW) tiling fallback for the case where one
    # (C, HW) sample block exceeds the VMEM budget (very large C*H*W).

    grid = (pl.cdiv(N, b_blk),)

    footprint = b_blk * io_per_sample + weight_bytes + live_bytes
    vmem_limit = int(min(int(vmem_cap * 0.9),
                         max(16 * 1024 * 1024, int(footprint * 1.5))))

    out = pl.pallas_call(
        saem_kernel,
        out_shape=jax.ShapeDtypeStruct((N, C, HW), jnp.float32),
        grid_spec=pltpu.PrefetchScalarGridSpec(
            num_scalar_prefetch=0,
            grid=grid,
            in_specs=[
                pl.BlockSpec((b_blk, C, HW), lambda n: (n, 0, 0)),   # x1
                pl.BlockSpec((b_blk, C, HW), lambda n: (n, 0, 0)),   # x2
                pl.BlockSpec((Ci, C), lambda n: (0, 0)),             # w1_eff
                pl.BlockSpec((Ci, 1), lambda n: (0, 0)),             # b1_eff
                pl.BlockSpec((Ci, C), lambda n: (0, 0)),             # w2_eff
                pl.BlockSpec((Ci, 1), lambda n: (0, 0)),             # b2_eff
                pl.BlockSpec((1, HW), lambda n: (0, 0)),             # wr
            ],
            out_specs=pl.BlockSpec((b_blk, C, HW), lambda n: (n, 0, 0)),
        ),
        compiler_params=pltpu.CompilerParams(
            dimension_semantics=("parallel",),
            vmem_limit_bytes=vmem_limit,
        ),
    )(x1f, x2f, params["w1_eff"], params["b1_eff"],
      params["w2_eff"], params["b2_eff"], wr)

    return out.reshape(N, C, H, W)


# --------------------------------------------------------------------------- #
# Parameter construction (1x1 Conv + eval-mode BN folded to affine)
# --------------------------------------------------------------------------- #
def fold_conv_bn(w_conv, b_conv, gamma, beta, mean, var, eps=1e-5):
    scale = gamma / jnp.sqrt(var + eps)                 # (Ci,)
    w_eff = scale[:, None] * w_conv                     # (Ci, C)
    b_eff = scale * (b_conv - mean) + beta              # (Ci,)
    return w_eff.astype(jnp.float32), b_eff.reshape(-1, 1).astype(jnp.float32)


def make_params(key, in_channels, inter_channels, size):
    Ci, C, HW = inter_channels, in_channels, size * size
    ks = jax.random.split(key, 12)
    # T1 branch: Conv2d(C->Ci, k=1) + BN(Ci)
    w1 = jax.random.normal(ks[0], (Ci, C)) * 0.2
    b1 = jax.random.normal(ks[1], (Ci,)) * 0.1
    g1 = 1.0 + 0.1 * jax.random.normal(ks[2], (Ci,))
    be1 = 0.1 * jax.random.normal(ks[3], (Ci,))
    m1 = 0.05 * jax.random.normal(ks[4], (Ci,))
    v1 = 1.0 + 0.1 * jnp.abs(jax.random.normal(ks[5], (Ci,)))
    # T2 branch
    w2 = jax.random.normal(ks[6], (Ci, C)) * 0.2
    b2 = jax.random.normal(ks[7], (Ci,)) * 0.1
    g2 = 1.0 + 0.1 * jax.random.normal(ks[8], (Ci,))
    be2 = 0.1 * jax.random.normal(ks[9], (Ci,))
    m2 = 0.05 * jax.random.normal(ks[10], (Ci,))
    v2 = 1.0 + 0.1 * jnp.abs(jax.random.normal(ks[11], (Ci,)))
    # dim_reduce: Conv1d(HW -> 1, k=1, bias=False): weight (1, HW, 1) -> (HW,)
    wr = jax.random.normal(jax.random.fold_in(key, 99), (HW,)) * 0.1

    w1e, b1e = fold_conv_bn(w1, b1, g1, be1, m1, v1)
    w2e, b2e = fold_conv_bn(w2, b2, g2, be2, m2, v2)
    return {
        "w1_eff": w1e, "b1_eff": b1e,
        "w2_eff": w2e, "b2_eff": b2e,
        "wr": wr.reshape(1, HW).astype(jnp.float32),
    }


def reference(x1, x2, params):
    """Pure-JAX mirror of the PyTorch forward (with folded conv+BN)."""
    N, C, H, W = x1.shape
    HW = H * W
    x1f = x1.reshape(N, C, HW)
    x2f = x2.reshape(N, C, HW)
    t1 = jax.nn.sigmoid(jnp.einsum("ic,ncp->nip", params["w1_eff"], x1f)
                        + params["b1_eff"][None])
    t2 = jax.nn.sigmoid(jnp.einsum("ic,ncp->nip", params["w2_eff"], x2f)
                        + params["b2_eff"][None])
    t1p = jnp.transpose(t1, (0, 2, 1))                  # (N, HW, Ci)
    aff = jnp.matmul(t1p, t2)                           # (N, HW, HW)
    aff = jnp.transpose(aff, (0, 2, 1))                 # permute(0, 2, 1)
    m = jnp.einsum("q,nqp->np", params["wr"][0], aff)   # Conv1d HW->1, no bias
    m = m.reshape(N, 1, H, W)
    return x1 * m


if __name__ == "__main__":
    # Small shapes: N=2, in_channels=8, inter_channels=in_channels//2=4, H=W=8
    N, C, H, W = 2, 8, 8, 8
    Ci = C // 2
    size = H  # module's `size` argument (H == W)

    key = jax.random.PRNGKey(0)
    k1, k2, kp = jax.random.split(key, 3)
    x1 = jax.random.normal(k1, (N, C, H, W), dtype=jnp.float32)
    x2 = jax.random.normal(k2, (N, C, H, W), dtype=jnp.float32)
    params = make_params(kp, C, Ci, size)

    out = spatial_enhance_module(x1, x2, params)
    out = jax.block_until_ready(out)

    ref = reference(x1, x2, params)
    np.testing.assert_allclose(np.asarray(out), np.asarray(ref), rtol=1e-5, atol=1e-5)
    assert out.shape == (N, C, H, W)
    print("KERNEL_OK")
</pallas_src>

<mosaic_0001>
module attributes {stable_mosaic.version = 11 : i64} {
  func.func @saem_kernel(%arg0: i32, %arg1: memref<2x8x64xf32, #tpu.memory_space<vmem>>, %arg2: memref<2x8x64xf32, #tpu.memory_space<vmem>>, %arg3: memref<4x8xf32, #tpu.memory_space<vmem>>, %arg4: memref<4x1xf32, #tpu.memory_space<vmem>>, %arg5: memref<4x8xf32, #tpu.memory_space<vmem>>, %arg6: memref<4x1xf32, #tpu.memory_space<vmem>>, %arg7: memref<1x64xf32, #tpu.memory_space<vmem>>, %arg8: memref<2x8x64xf32, #tpu.memory_space<vmem>>) attributes {dimension_semantics = [#tpu.dimension_semantics<parallel>], iteration_bounds = array<i64: 1>, scalar_prefetch = 0 : i64, scratch_operands = 0 : i64, tpu.core_type = #tpu.core_type<tc>, window_params = [{transform_indices = @transform_0, window_bounds = array<i64: 2, 8, 64>}, {transform_indices = @transform_1, window_bounds = array<i64: 2, 8, 64>}, {pipeline_mode = #tpu.pipeline_mode<synchronous>, transform_indices = @transform_2, window_bounds = array<i64: 4, 8>}, {pipeline_mode = #tpu.pipeline_mode<synchronous>, transform_indices = @transform_3, window_bounds = array<i64: 4, 1>}, {pipeline_mode = #tpu.pipeline_mode<synchronous>, transform_indices = @transform_4, window_bounds = array<i64: 4, 8>}, {pipeline_mode = #tpu.pipeline_mode<synchronous>, transform_indices = @transform_5, window_bounds = array<i64: 4, 1>}, {pipeline_mode = #tpu.pipeline_mode<synchronous>, transform_indices = @transform_6, window_bounds = array<i64: 1, 64>}, {transform_indices = @transform_7, window_bounds = array<i64: 2, 8, 64>}]} {
    %c0 = arith.constant 0 : index
    %c0_0 = arith.constant 0 : index
    %0 = vector.load %arg3[%c0, %c0_0] : memref<4x8xf32, #tpu.memory_space<vmem>>, vector<4x8xf32>
    %c0_1 = arith.constant 0 : index
    %c0_2 = arith.constant 0 : index
    %1 = vector.load %arg4[%c0_1, %c0_2] : memref<4x1xf32, #tpu.memory_space<vmem>>, vector<4x1xf32>
    %c0_3 = arith.constant 0 : index
    %c0_4 = arith.constant 0 : index
    %2 = vector.load %arg5[%c0_3, %c0_4] : memref<4x8xf32, #tpu.memory_space<vmem>>, vector<4x8xf32>
    %c0_5 = arith.constant 0 : index
    %c0_6 = arith.constant 0 : index
    %3 = vector.load %arg6[%c0_5, %c0_6] : memref<4x1xf32, #tpu.memory_space<vmem>>, vector<4x1xf32>
    %c0_7 = arith.constant 0 : index
    %c0_8 = arith.constant 0 : index
    %4 = vector.load %arg7[%c0_7, %c0_8] : memref<1x64xf32, #tpu.memory_space<vmem>>, vector<1x64xf32>
    %c0_i32 = arith.constant 0 : i32
    %c2_i32 = arith.constant 2 : i32
    %5 = arith.addi %c0_i32, %c2_i32 : i32
    %c1_i32 = arith.constant 1 : i32
    scf.for %arg9 = %c0_i32 to %5 step %c1_i32  : i32 {
      %6 = arith.index_cast %arg9 : i32 to index
      %c0_10 = arith.constant 0 : index
      %c0_11 = arith.constant 0 : index
      %7 = vector.load %arg1[%6, %c0_10, %c0_11] : memref<2x8x64xf32, #tpu.memory_space<vmem>>, vector<1x8x64xf32>
      %8 = vector.shape_cast %7 : vector<1x8x64xf32> to vector<8x64xf32>
      %9 = arith.index_cast %arg9 : i32 to index
      %c0_12 = arith.constant 0 : index
      %c0_13 = arith.constant 0 : index
      %10 = vector.load %arg2[%9, %c0_12, %c0_13] : memref<2x8x64xf32, #tpu.memory_space<vmem>>, vector<1x8x64xf32>
      %11 = vector.shape_cast %10 : vector<1x8x64xf32> to vector<8x64xf32>
      %cst = arith.constant dense<0.000000e+00> : vector<4x64xf32>
      %12 = tpu.matmul %0, %8, %cst {dimension_numbers = #tpu.dot_dimension_numbers<[1], [0], [0], [1], [0, 0, 1, 1], [], []>} : vector<4x8xf32>, vector<8x64xf32>, vector<4x64xf32> -> vector<4x64xf32>
      %13 = vector.broadcast %1 : vector<4x1xf32> to vector<4x64xf32>
      %14 = arith.addf %12, %13 : vector<4x64xf32>
      %15 = arith.negf %14 : vector<4x64xf32>
      %16 = math.exp %15 : vector<4x64xf32>
      %cst_14 = arith.constant 1.000000e+00 : f32
      %17 = vector.broadcast %cst_14 : f32 to vector<4x64xf32>
      %18 = arith.addf %17, %16 : vector<4x64xf32>
      %19 = arith.divf %17, %18 : vector<4x64xf32>
      %cst_15 = arith.constant dense<0.000000e+00> : vector<4x64xf32>
      %20 = tpu.matmul %2, %11, %cst_15 {dimension_numbers = #tpu.dot_dimension_numbers<[1], [0], [0], [1], [0, 0, 1, 1], [], []>} : vector<4x8xf32>, vector<8x64xf32>, vector<4x64xf32> -> vector<4x64xf32>
      %21 = vector.broadcast %3 : vector<4x1xf32> to vector<4x64xf32>
      %22 = arith.addf %20, %21 : vector<4x64xf32>
      %23 = arith.negf %22 : vector<4x64xf32>
      %24 = math.exp %23 : vector<4x64xf32>
      %cst_16 = arith.constant 1.000000e+00 : f32
      %25 = vector.broadcast %cst_16 : f32 to vector<4x64xf32>
      %26 = arith.addf %25, %24 : vector<4x64xf32>
      %27 = arith.divf %25, %26 : vector<4x64xf32>
      %28 = vector.broadcast %4 : vector<1x64xf32> to vector<4x64xf32>
      %29 = arith.mulf %27, %28 : vector<4x64xf32>
      %cst_17 = arith.constant dense<0.000000e+00> : vector<4xf32>
      %30 = vector.multi_reduction <add>, %29, %cst_17 [1] : vector<4x64xf32> to vector<4xf32>
      %31 = vector.shape_cast %30 : vector<4xf32> to vector<4x1xf32>
      %32 = vector.broadcast %31 : vector<4x1xf32> to vector<4x64xf32>
      %33 = arith.mulf %32, %19 : vector<4x64xf32>
      %cst_18 = arith.constant dense<0.000000e+00> : vector<64xf32>
      %34 = vector.multi_reduction <add>, %33, %cst_18 [0] : vector<4x64xf32> to vector<64xf32>
      %35 = vector.shape_cast %34 : vector<64xf32> to vector<1x64xf32>
      %36 = vector.broadcast %35 : vector<1x64xf32> to vector<8x64xf32>
      %37 = arith.mulf %8, %36 : vector<8x64xf32>
      %38 = arith.index_cast %arg9 : i32 to index
      %c0_19 = arith.constant 0 : index
      %c0_20 = arith.constant 0 : index
      %39 = vector.load %arg8[%38, %c0_19, %c0_20] : memref<2x8x64xf32, #tpu.memory_space<vmem>>, vector<1x8x64xf32>
      %40 = vector.shape_cast %39 : vector<1x8x64xf32> to vector<8x64xf32>
      %41 = vector.shape_cast %37 : vector<8x64xf32> to vector<1x8x64xf32>
      tpu.vector_store %arg8[%38, %c0_19, %c0_20], %41 {strides = array<i32>} : memref<2x8x64xf32, #tpu.memory_space<vmem>>, vector<1x8x64xf32>,
    }
    %c2_i32_9 = arith.constant 2 : i32
    return
  }
  func.func @transform_0(%arg0: i32) -> (i32, i32, i32) {
    %c0_i32 = arith.constant 0 : i32
    %c0_i32_0 = arith.constant 0 : i32
    %c0_i32_1 = arith.constant 0 : i32
    return %arg0, %c0_i32, %c0_i32_0 : i32, i32, i32
  }
  func.func @transform_1(%arg0: i32) -> (i32, i32, i32) {
    %c0_i32 = arith.constant 0 : i32
    %c0_i32_0 = arith.constant 0 : i32
    %c0_i32_1 = arith.constant 0 : i32
    return %arg0, %c0_i32, %c0_i32_0 : i32, i32, i32
  }
  func.func @transform_2(%arg0: i32) -> (i32, i32) {
    %c0_i32 = arith.constant 0 : i32
    %c0_i32_0 = arith.constant 0 : i32
    %c0_i32_1 = arith.constant 0 : i32
    return %c0_i32, %c0_i32_0 : i32, i32
  }
  func.func @transform_3(%arg0: i32) -> (i32, i32) {
    %c0_i32 = arith.constant 0 : i32
    %c0_i32_0 = arith.constant 0 : i32
    %c0_i32_1 = arith.constant 0 : i32
    return %c0_i32, %c0_i32_0 : i32, i32
  }
  func.func @transform_4(%arg0: i32) -> (i32, i32) {
    %c0_i32 = arith.constant 0 : i32
    %c0_i32_0 = arith.constant 0 : i32
    %c0_i32_1 = arith.constant 0 : i32
    return %c0_i32, %c0_i32_0 : i32, i32
  }
  func.func @transform_5(%arg0: i32) -> (i32, i32) {
    %c0_i32 = arith.constant 0 : i32
    %c0_i32_0 = arith.constant 0 : i32
    %c0_i32_1 = arith.constant 0 : i32
    return %c0_i32, %c0_i32_0 : i32, i32
  }
  func.func @transform_6(%arg0: i32) -> (i32, i32) {
    %c0_i32 = arith.constant 0 : i32
    %c0_i32_0 = arith.constant 0 : i32
    %c0_i32_1 = arith.constant 0 : i32
    return %c0_i32, %c0_i32_0 : i32, i32
  }
  func.func @transform_7(%arg0: i32) -> (i32, i32, i32) {
    %c0_i32 = arith.constant 0 : i32
    %c0_i32_0 = arith.constant 0 : i32
    %c0_i32_1 = arith.constant 0 : i32
    return %arg0, %c0_i32, %c0_i32_0 : i32, i32, i32
  }
}

</mosaic_0001>

<llo_original>
// kernel: tpu_custom_call.1
$region0: #{tpu_custom_call.1}
  #allocation0 [shape = 'u32[]', space=smem, size = 0x4, offset = 0x4, fixed_abs, tag = 'smem constant byte address 0x4 - core index']
  #allocation1 [shape = 'u32[144,128]{1,0:T(1,128)}', space=vmem, size = 0x12000, scoped, tag = 'internal scratch']
  %s0 = inlined_call_operand.hbm [shape: f32[2,8,64], index: 0, kind: input, shape index: {}]
  %s1 = inlined_call_operand.hbm [shape: f32[2,8,64], index: 1, kind: input, shape index: {}]
  %s2 = inlined_call_operand.vmem [shape: f32[4,8], index: 2, kind: input, shape index: {}]
  %s3 = inlined_call_operand.vmem [shape: f32[4,1], index: 3, kind: input, shape index: {}]
  %s4 = inlined_call_operand.vmem [shape: f32[4,8], index: 4, kind: input, shape index: {}]
  %s5 = inlined_call_operand.vmem [shape: f32[4,1], index: 5, kind: input, shape index: {}]
  %s6 = inlined_call_operand.vmem [shape: f32[1,64], index: 6, kind: input, shape index: {}]
  %s7 = inlined_call_operand.hbm [shape: f32[2,8,64], index: 7, kind: output, shape index: {}]
  %s8 = sld [smem:[#allocation0]]
  $region53: #{tpu_custom_call.1} parent=0
    _
  %s10 = ssub.s32 1, %s8
  %s11 = scalar_select 0, %s10, %s8
  $region1: #{tpu_custom_call.1} parent=0
    #allocation2 [shape = 'u8[8192]{0}', space=vmem, size = 0x2000, scoped, tag = 'input window, operand 0, single buffered']
    #allocation3 [shape = 's32[1]{0}', space=sflag, size = 0x4, scoped, tag = 'scoped memory for tpu_custom_call.1']
    #allocation4 [shape = 's32[1]{0}', space=sflag, size = 0x4, scoped, tag = 'scoped memory for tpu_custom_call.1']
    #allocation5 [shape = 'u8[8192]{0}', space=vmem, size = 0x2000, scoped, tag = 'input window, operand 1, single buffered']
    #allocation6 [shape = 's32[1]{0}', space=sflag, size = 0x4, scoped, tag = 'scoped memory for tpu_custom_call.1']
    #allocation7 [shape = 'u8[8192]{0}', space=vmem, size = 0x2000, scoped, tag = 'output window, operand 0, single buffered']
    %12 = vsyncpa [#allocation3], 0
    %13 = vsyncpa [#allocation6], 0
    %14 = vsyncpa [#allocation4], 0
    // Predicated region
    $region2: #{tpu_custom_call.1} parent=1 // pred_check
      _
    $region3: #{tpu_custom_call.1} parent=1 // pred_check_branch
      %16 = sbr.rel (0) target = $region5
    $region4: #{tpu_custom_call.1} parent=1 // pred_region
      %s18 = ssub.s32 256, 256
      %19 = vsyncadd [#allocation3], %s18
      %s20 = sshll.u32 [#allocation2], 4
      %s21 = int_to_ptr.vmem [resolvable:$true] %s20
      %26 = dma.hbm_to_vmem [thread:$0]  %s0, 256, %s21, [#allocation3], 128, 128, 8
    $region5: #{tpu_custom_call.1} parent=1 // pred_fallthru
      _
    // Predicated region
    $region6: #{tpu_custom_call.1} parent=1 // pred_check
      _
    $region7: #{tpu_custom_call.1} parent=1 // pred_check_branch
      %28 = sbr.rel (0) target = $region9
    $region8: #{tpu_custom_call.1} parent=1 // pred_region
      %s30 = ssub.s32 256, 256
      %31 = vsyncadd [#allocation6], %s30
      %s32 = sshll.u32 [#allocation5], 4
      %s33 = int_to_ptr.vmem [resolvable:$true] %s32
      %38 = dma.hbm_to_vmem [thread:$0]  %s1, 256, %s33, [#allocation6], 128, 128, 8
    $region9: #{tpu_custom_call.1} parent=1 // pred_fallthru
      _
    // Predicated region
    $region10: #{tpu_custom_call.1} parent=1 // pred_check
      _
    $region11: #{tpu_custom_call.1} parent=1 // pred_check_branch
      %40 = sbr.rel (0) target = $region13
    $region12: #{tpu_custom_call.1} parent=1 // pred_region
      _
    $region13: #{tpu_custom_call.1} parent=1 // pred_fallthru
      _
    // Predicated region
    $region14: #{tpu_custom_call.1} parent=1 // pred_check
      _
    $region15: #{tpu_custom_call.1} parent=1 // pred_check_branch
      %42 = sbr.rel (0) target = $region17
    $region16: #{tpu_custom_call.1} parent=1 // pred_region
      _
    $region17: #{tpu_custom_call.1} parent=1 // pred_fallthru
      _
    // Predicated region
    $region18: #{tpu_custom_call.1} parent=1 // pred_check
      _
    $region19: #{tpu_custom_call.1} parent=1 // pred_check_branch
      %44 = sbr.rel (0) target = $region21
    $region20: #{tpu_custom_call.1} parent=1 // pred_region
      _
    $region21: #{tpu_custom_call.1} parent=1 // pred_fallthru
      _
    // Predicated region
    $region22: #{tpu_custom_call.1} parent=1 // pred_check
      _
    $region23: #{tpu_custom_call.1} parent=1 // pred_check_branch
      %46 = sbr.rel (0) target = $region25
    $region24: #{tpu_custom_call.1} parent=1 // pred_region
      _
    $region25: #{tpu_custom_call.1} parent=1 // pred_fallthru
      _
    // Predicated region
    $region26: #{tpu_custom_call.1} parent=1 // pred_check
      _
    $region27: #{tpu_custom_call.1} parent=1 // pred_check_branch
      %48 = sbr.rel (0) target = $region29
    $region28: #{tpu_custom_call.1} parent=1 // pred_region
      _
    $region29: #{tpu_custom_call.1} parent=1 // pred_fallthru
      _
    // Predicated region
    $region30: #{tpu_custom_call.1} parent=1 // pred_check
      _
    $region31: #{tpu_custom_call.1} parent=1 // pred_check_branch
      %50 = sbr.rel (0) target = $region33
    $region32: #{tpu_custom_call.1} parent=1 // pred_region
      %51 = dma.done [#allocation3], 256
    $region33: #{tpu_custom_call.1} parent=1 // pred_fallthru
      _
    // Predicated region
    $region34: #{tpu_custom_call.1} parent=1 // pred_check
      _
    $region35: #{tpu_custom_call.1} parent=1 // pred_check_branch
      %53 = sbr.rel (0) target = $region37
    $region36: #{tpu_custom_call.1} parent=1 // pred_region
      %54 = dma.done [#allocation6], 256
    $region37: #{tpu_custom_call.1} parent=1 // pred_fallthru
      _
    %v55 = vld [vmem:[%s2] sm:$0xf]
    %v56 = vld [vmem:[%s3] sm:$0xf]
    %v57 = vld [vmem:[%s4] sm:$0xf]
    %v58 = vld [vmem:[%s5] sm:$0xf]
    %v59 = vld [vmem:[%s6] sm:$0x1]
    loop: start=0, step=1, limit=2
    $region38: #{tpu_custom_call.1} parent=1 // loop_pre_header
      _
    $region39: #{tpu_custom_call.1} parent=1 // loop_header
      %s61 = sphi 0, %s65
      %p62 = scmp.ge.s32.totalorder %s61, 2
    $region40: #{tpu_custom_call.1} parent=1 // loop_header_branch
      %64 = sbr.rel (%p62) target = $region44
    $region41: #{tpu_custom_call.1} parent=1 // loop_body
      %s66 = smul.u32 %s61, 8
      %s67 = scalar_lea.vmem [#allocation2], %s66
      %v68 = vld [vmem:[%s67] sm:$0xff]
      %s69 = scalar_lea.vmem [#allocation5], %s66
      %v70 = vld [vmem:[%s69] sm:$0xff]
      %72 = vset.pattern.permute.xlu0 0
      %73 = vperm.xlu0 %72, %v56
      %v74 = vpop.permute.xlu0 %73
      %vm76 = vcmask 64512
      %v78 = vsel %vm76, %v55, 0
      %80 = vmatprep.subr.mxu0 0.0
      %81 = vmatpush1.msra.mxu0 %v68
      %82 = vmatprep.subr.mxu0 0.0
      %83 = vmatpush1.msra.mxu0 0.0
      %84 = vmatprep.subr.mxu0 0.0
      %85 = vmatpush1.msra.mxu0 0.0
      %86 = vmatprep.subr.mxu0 0.0
      %87 = vmatpush1.msra.mxu0 0.0
      %88 = vmatprep.subr.mxu0 0.0
      %89 = vmatpush1.msra.mxu0 0.0
      %90 = vmatprep.subr.mxu0 0.0
      %91 = vmatpush1.msra.mxu0 0.0
      %92 = vmatprep.subr.mxu0 0.0
      %93 = vmatpush1.msra.mxu0 0.0
      %94 = vmatprep.subr.mxu0 0.0
      %95 = vmatpush1.msra.mxu0 0.0
      %96 = vmatprep.subr.mxu0 0.0
      %97 = vmatpush1.msra.mxu0 0.0
      %98 = vmatprep.subr.mxu0 0.0
      %99 = vmatpush1.msra.mxu0 0.0
      %100 = vmatprep.subr.mxu0 0.0
      %101 = vmatpush1.msra.mxu0 0.0
      %102 = vmatprep.subr.mxu0 0.0
      %103 = vmatpush1.msra.mxu0 0.0
      %104 = vmatprep.subr.mxu0 0.0
      %105 = vmatpush1.msra.mxu0 0.0
      %106 = vmatprep.subr.mxu0 0.0
      %107 = vmatpush1.msra.mxu0 0.0
      %108 = vmatprep.subr.mxu0 0.0
      %109 = vmatpush1.msra.mxu0 0.0
      %110 = vmatprep.subr.mxu0 0.0
      %111 = vmatpush1.msra.mxu0 0.0
      %112 = vmatprep.subr.mxu0 0.0
      %113 = vmatpush1.msra.mxu0 0.0
      %114 = vmatprep.subr.mxu0 0.0
      %115 = vmatpush1.msra.mxu0 0.0
      %116 = vmatprep.subr.mxu0 0.0
      %117 = vmatpush1.msra.mxu0 0.0
      %118 = vmatprep.subr.mxu0 0.0
      %119 = vmatpush1.msra.mxu0 0.0
      %120 = vmatprep.subr.mxu0 0.0
      %121 = vmatpush1.msra.mxu0 0.0
      %122 = vmatprep.subr.mxu0 0.0
      %123 = vmatpush1.msra.mxu0 0.0
      %124 = vmatprep.subr.mxu0 0.0
      %125 = vmatpush1.msra.mxu0 0.0
      %126 = vmatprep.subr.mxu0 0.0
      %127 = vmatpush1.msra.mxu0 0.0
      %128 = vmatprep.subr.mxu0 0.0
      %129 = vmatpush1.msra.mxu0 0.0
      %130 = vmatprep.subr.mxu0 0.0
      %131 = vmatpush1.msra.mxu0 0.0
      %132 = vmatprep.subr.mxu0 0.0
      %133 = vmatpush1.msra.mxu0 0.0
      %134 = vmatprep.subr.mxu0 0.0
      %135 = vmatpush1.msra.mxu0 0.0
      %136 = vmatprep.subr.mxu0 0.0
      %137 = vmatpush1.msra.mxu0 0.0
      %138 = vmatprep.subr.mxu0 0.0
      %139 = vmatpush1.msra.mxu0 0.0
      %140 = vmatprep.subr.mxu0 0.0
      %141 = vmatpush1.msra.mxu0 0.0
      %142 = vmatprep.subr.mxu0 0.0
      %143 = vmatpush1.msra.mxu0 0.0
      %144 = vmatprep.mubr.f32.mxu0 0.0
      %145 = vmatmul.mubr.f32.gmra.mrb[0].mxu0 %v78
      %v146 = vpop.f32.mrb[0].mxu0
      %v147 = vadd.f32 %v74, %v146
      %v148 = vpop.f32.mrb[0].mxu0
      %149 = vdwg.mxu0
      %v150 = vxor.u32 %v147, 2147483648
      %v151 = vmul.f32 %v150, 1.442695
      %v152 = vpow.pop %v151
      %v153 = vadd.f32 %v152, 1.0
      %v154 = vrcp.pop %v153
      %v155 = vmul.f32 1.0, %v154
      %157 = vset.pattern.permute.xlu0 0
      %158 = vperm.xlu0 %157, %v58
      %v159 = vpop.permute.xlu0 %158
      %v162 = vsel %vm76, %v57, 0
      %164 = vmatprep.subr.mxu0 0.0
      %165 = vmatpush1.msra.mxu0 %v70
      %166 = vmatprep.subr.mxu0 0.0
      %167 = vmatpush1.msra.mxu0 0.0
      %168 = vmatprep.subr.mxu0 0.0
      %169 = vmatpush1.msra.mxu0 0.0
      %170 = vmatprep.subr.mxu0 0.0
      %171 = vmatpush1.msra.mxu0 0.0
      %172 = vmatprep.subr.mxu0 0.0
      %173 = vmatpush1.msra.mxu0 0.0
      %174 = vmatprep.subr.mxu0 0.0
      %175 = vmatpush1.msra.mxu0 0.0
      %176 = vmatprep.subr.mxu0 0.0
      %177 = vmatpush1.msra.mxu0 0.0
      %178 = vmatprep.subr.mxu0 0.0
      %179 = vmatpush1.msra.mxu0 0.0
      %180 = vmatprep.subr.mxu0 0.0
      %181 = vmatpush1.msra.mxu0 0.0
      %182 = vmatprep.subr.mxu0 0.0
      %183 = vmatpush1.msra.mxu0 0.0
      %184 = vmatprep.subr.mxu0 0.0
      %185 = vmatpush1.msra.mxu0 0.0
      %186 = vmatprep.subr.mxu0 0.0
      %187 = vmatpush1.msra.mxu0 0.0
      %188 = vmatprep.subr.mxu0 0.0
      %189 = vmatpush1.msra.mxu0 0.0
      %190 = vmatprep.subr.mxu0 0.0
      %191 = vmatpush1.msra.mxu0 0.0
      %192 = vmatprep.subr.mxu0 0.0
      %193 = vmatpush1.msra.mxu0 0.0
      %194 = vmatprep.subr.mxu0 0.0
      %195 = vmatpush1.msra.mxu0 0.0
      %196 = vmatprep.subr.mxu0 0.0
      %197 = vmatpush1.msra.mxu0 0.0
      %198 = vmatprep.subr.mxu0 0.0
      %199 = vmatpush1.msra.mxu0 0.0
      %200 = vmatprep.subr.mxu0 0.0
      %201 = vmatpush1.msra.mxu0 0.0
      %202 = vmatprep.subr.mxu0 0.0
      %203 = vmatpush1.msra.mxu0 0.0
      %204 = vmatprep.subr.mxu0 0.0
      %205 = vmatpush1.msra.mxu0 0.0
      %206 = vmatprep.subr.mxu0 0.0
      %207 = vmatpush1.msra.mxu0 0.0
      %208 = vmatprep.subr.mxu0 0.0
      %209 = vmatpush1.msra.mxu0 0.0
      %210 = vmatprep.subr.mxu0 0.0
      %211 = vmatpush1.msra.mxu0 0.0
      %212 = vmatprep.subr.mxu0 0.0
      %213 = vmatpush1.msra.mxu0 0.0
      %214 = vmatprep.subr.mxu0 0.0
      %215 = vmatpush1.msra.mxu0 0.0
      %216 = vmatprep.subr.mxu0 0.0
      %217 = vmatpush1.msra.mxu0 0.0
      %218 = vmatprep.subr.mxu0 0.0
      %219 = vmatpush1.msra.mxu0 0.0
      %220 = vmatprep.subr.mxu0 0.0
      %221 = vmatpush1.msra.mxu0 0.0
      %222 = vmatprep.subr.mxu0 0.0
      %223 = vmatpush1.msra.mxu0 0.0
      %224 = vmatprep.subr.mxu0 0.0
      %225 = vmatpush1.msra.mxu0 0.0
      %226 = vmatprep.subr.mxu0 0.0
      %227 = vmatpush1.msra.mxu0 0.0
      %228 = vmatprep.mubr.f32.mxu0 0.0
      %229 = vmatmul.mubr.f32.gmra.mrb[0].mxu0 %v162
      %v230 = vpop.f32.mrb[0].mxu0
      %v231 = vadd.f32 %v159, %v230
      %v232 = vpop.f32.mrb[0].mxu0
      %233 = vdwg.mxu0
      %v234 = vxor.u32 %v231, 2147483648
      %v235 = vmul.f32 %v234, 1.442695
      %v236 = vpow.pop %v235
      %v237 = vadd.f32 %v236, 1.0
      %v238 = vrcp.pop %v237
      %v239 = vmul.f32 1.0, %v238
      %v241 = vlaneseq
      %v242 = vshrl.u32 %v241, 7
      %v243 = vsub.s32 0, %v242
      %v244 = vrot.slane %v59, %v243
      %v246 = vmul.f32 %v239, %v244
      %vm247 = vcmask 519168
      %v248 = vsel %vm247, %v246, 0.0
      %249 = vadd.xlane.f32.xlu0 %v248
      %v250 = vpop.xlane.xlu0 %249
      %v251 = vmul.f32 %v250, %v155
      %v252 = vsel %vm247, %v251, 0.0
      %v253 = vrot.slane %v252, 4
      %v254 = vadd.f32 %v252, %v253
      %v255 = vrot.slane %v254, 2
      %v256 = vadd.f32 %v254, %v255
      %v257 = vrot.slane %v256, 1
      %v258 = vadd.f32 %v256, %v257
      %v259 = vmul.f32 %v68, %v258
      %s260 = scalar_lea.vmem [#allocation7], %s66
      %vm261 = vcmask 523264
      %262 = vst.msk [vmem:[%s260] sm:$0xff] %vm261, %v259
    $region42: #{tpu_custom_call.1} parent=1 // loop_footer
      %s65 = sadd.s32 1, %s61
    $region43: #{tpu_custom_call.1} parent=1 // loop_footer_branch
      %60 = sbr.rel target = $region39
    $region44: #{tpu_custom_call.1} parent=1 // loop_exit
      _
    // Predicated region
    $region45: #{tpu_custom_call.1} parent=1 // pred_check
      _
    $region46: #{tpu_custom_call.1} parent=1 // pred_check_branch
      %264 = sbr.rel (0) target = $region48
    $region47: #{tpu_custom_call.1} parent=1 // pred_region
      %s266 = ssub.s32 256, 256
      %267 = vsyncadd [#allocation4], %s266
      %s268 = sshll.u32 [#allocation7], 4
      %s269 = int_to_ptr.vmem [resolvable:$true] %s268
      %274 = dma.vmem_to_hbm [thread:$0]  %s269, 256, %s7, [#allocation4], 128, 128, 8
    $region48: #{tpu_custom_call.1} parent=1 // pred_fallthru
      _
    // Predicated region
    $region49: #{tpu_custom_call.1} parent=1 // pred_check
      _
    $region50: #{tpu_custom_call.1} parent=1 // pred_check_branch
      %276 = sbr.rel (0) target = $region52
    $region51: #{tpu_custom_call.1} parent=1 // pred_region
      %277 = dma.done [#allocation4], 256
    $region52: #{tpu_custom_call.1} parent=1 // pred_fallthru
      _
    %278 = vsyncpa [#allocation3], 1
    %279 = vsyncpa [#allocation6], 1
    %280 = vsyncpa [#allocation4], 1

</llo_original>
